<compile_context>
chip_gen: v7x
topology: tpu7x:2x2x1
jax: 0.10.0
libtpu: 0.0.40
codegen_flags: <defaults>
</compile_context>

<pallas_src>
import jax
import jax.numpy as jnp
from jax import lax
from jax.experimental import pallas as pl
from jax.experimental.pallas import tpu as pltpu

BN_EPS = 1e-5


def projection_mlp_kernel(x_ref, w1_ref, gamma_ref, beta_ref, w2_ref, o_ref):
    # ---- layer1: Linear (no bias), bf16 operands -> f32 accumulation (MXU) ----
    x_bf16 = x_ref[...].astype(jnp.bfloat16)
    h = jnp.dot(x_bf16, w1_ref[...],
                preferred_element_type=jnp.float32)           # (B, hidden) f32

    # ---- layer1_bn: BatchNorm1d(affine=True), batch stats, f32 math ----
    mean1 = jnp.mean(h, axis=0, keepdims=True)                # (1, hidden)
    hc = h - mean1                                            # centered; reused
    var1 = jnp.mean(hc * hc, axis=0, keepdims=True)
    scale1 = gamma_ref[...] * lax.rsqrt(var1 + BN_EPS)        # gamma folded (EUP)
    # one FMA + relu per element (scale/shift form of BN1)
    h = jnp.maximum(hc * scale1 + beta_ref[...], 0.0)

    # ---- layer2: Linear (no bias), bf16 operands -> f32 accumulation ----
    z = jnp.dot(h.astype(jnp.bfloat16), w2_ref[...],
                preferred_element_type=jnp.float32)           # (B, out) f32

    # ---- layer2_bn: BatchNorm1d(affine=False), batch stats ----
    mean2 = jnp.mean(z, axis=0, keepdims=True)
    zc = z - mean2                                            # centered; reused
    var2 = jnp.mean(zc * zc, axis=0, keepdims=True)
    o_ref[...] = zc * lax.rsqrt(var2 + BN_EPS)


def prepare_params(w1_t, gamma, beta, w2_t):
    """One-time parameter prep (hoisted out of the per-call path).

    w1_t: (in_dim, hidden), w2_t: (hidden, out) -- weights stored transposed.
    Returns bf16 weights and 2-D f32 BN params ready for the kernel.
    """
    return (w1_t.astype(jnp.bfloat16),
            gamma.reshape(1, -1).astype(jnp.float32),
            beta.reshape(1, -1).astype(jnp.float32),
            w2_t.astype(jnp.bfloat16))


def _vmem_capacity_bytes():
    try:
        return int(pltpu.get_tpu_info().vmem_capacity_bytes)
    except Exception:
        return 64 * 1024 * 1024  # conservative (v7x-sized) fallback


def projection_mlp(x, w1_b, gamma2d, beta2d, w2_b):
    """x: (B, in_dim) f32; w1_b: (in_dim, hidden) bf16; gamma2d/beta2d:
    (1, hidden) f32; w2_b: (hidden, out_dim) bf16.  Returns (B, out_dim) f32."""
    B, in_dim = x.shape
    hidden_dim = w1_b.shape[1]
    out_dim = w2_b.shape[1]

    # Single block, no grid -> no double-buffering.  io + f32 intermediates
    # (h, z) + small margin, capped by the chip's physical VMEM.
    io_bytes = (x.size * 4                              # f32 input
                + (w1_b.size + w2_b.size) * 2           # bf16 weights
                + (gamma2d.size + beta2d.size) * 4      # f32 BN params
                + B * out_dim * 4)                      # f32 output
    interm_bytes = B * (hidden_dim + out_dim) * 4
    vmem_limit = int(min(_vmem_capacity_bytes(),
                         max(io_bytes + interm_bytes + (2 << 20), 4 << 20)))

    cost = pl.CostEstimate(
        flops=2 * B * (in_dim * hidden_dim + hidden_dim * out_dim),
        transcendentals=hidden_dim + out_dim,           # the two rsqrt vectors
        bytes_accessed=io_bytes,
    )

    vmem = pltpu.MemorySpace.VMEM
    # Every block equals the full array dims, so non-(8,128)-aligned feature
    # dims are legal; Mosaic pads the tiles internally.
    return pl.pallas_call(
        projection_mlp_kernel,
        out_shape=jax.ShapeDtypeStruct((B, out_dim), jnp.float32),
        in_specs=[
            pl.BlockSpec((B, in_dim), lambda: (0, 0), memory_space=vmem),
            pl.BlockSpec((in_dim, hidden_dim), lambda: (0, 0), memory_space=vmem),
            pl.BlockSpec((1, hidden_dim), lambda: (0, 0), memory_space=vmem),
            pl.BlockSpec((1, hidden_dim), lambda: (0, 0), memory_space=vmem),
            pl.BlockSpec((hidden_dim, out_dim), lambda: (0, 0), memory_space=vmem),
        ],
        out_specs=pl.BlockSpec((B, out_dim), lambda: (0, 0), memory_space=vmem),
        compiler_params=pltpu.CompilerParams(vmem_limit_bytes=vmem_limit),
        cost_estimate=cost,
    )(x, w1_b, gamma2d, beta2d, w2_b)


projection_mlp_jit = jax.jit(projection_mlp)


def projection_mlp_ref_bf16(x, w1_t, gamma, beta, w2_t):
    """Pure-JAX reference mirroring the kernel's numerics (bf16 matmul path,
    f32 accumulation, f32 BN math)."""
    h = jnp.dot(x.astype(jnp.bfloat16), w1_t.astype(jnp.bfloat16),
                preferred_element_type=jnp.float32)
    m1 = h.mean(0, keepdims=True)
    hc = h - m1
    v1 = (hc * hc).mean(0, keepdims=True)
    h = jnp.maximum(hc * (gamma * lax.rsqrt(v1 + BN_EPS)) + beta, 0.0)
    z = jnp.dot(h.astype(jnp.bfloat16), w2_t.astype(jnp.bfloat16),
                preferred_element_type=jnp.float32)
    m2 = z.mean(0, keepdims=True)
    zc = z - m2
    v2 = (zc * zc).mean(0, keepdims=True)
    return zc * lax.rsqrt(v2 + BN_EPS)


def projection_mlp_ref_f32(x, w1_t, gamma, beta, w2_t):
    """Full-f32 reference of the PyTorch module (loose sanity check only,
    since the kernel intentionally uses bf16 on the matmul path)."""
    h = x @ w1_t
    m1 = h.mean(0, keepdims=True)
    v1 = ((h - m1) ** 2).mean(0, keepdims=True)
    h = (h - m1) / jnp.sqrt(v1 + BN_EPS) * gamma + beta
    h = jnp.maximum(h, 0.0)
    z = h @ w2_t
    m2 = z.mean(0, keepdims=True)
    v2 = ((z - m2) ** 2).mean(0, keepdims=True)
    return (z - m2) / jnp.sqrt(v2 + BN_EPS)


if __name__ == "__main__":
    # Small shapes consistent with the module: ProjectionMLP(in_dim=32, 64, 64)
    B, in_dim, hidden_dim, out_dim = 8, 32, 64, 64

    key = jax.random.PRNGKey(0)
    kx, k1, k2 = jax.random.split(key, 3)

    x = jax.random.normal(kx, (B, in_dim), dtype=jnp.float32)

    # nn.Linear-style Kaiming-uniform init, stored transposed: (in, out).
    bound1 = 1.0 / jnp.sqrt(in_dim)
    w1_t = jax.random.uniform(k1, (in_dim, hidden_dim), jnp.float32,
                              minval=-bound1, maxval=bound1)
    bound2 = 1.0 / jnp.sqrt(hidden_dim)
    w2_t = jax.random.uniform(k2, (hidden_dim, out_dim), jnp.float32,
                              minval=-bound2, maxval=bound2)

    # BatchNorm1d(affine=True) default init: gamma=1, beta=0 (1-D like PyTorch).
    gamma = jnp.ones((hidden_dim,), dtype=jnp.float32)
    beta = jnp.zeros((hidden_dim,), dtype=jnp.float32)

    # One-time parameter prep (hoisted out of the per-call path).
    w1_b, gamma2d, beta2d, w2_b = jax.block_until_ready(
        prepare_params(w1_t, gamma, beta, w2_t))

    out = projection_mlp_jit(x, w1_b, gamma2d, beta2d, w2_b)
    out = jax.block_until_ready(out)
    assert out.shape == (B, out_dim)

    # Tight check vs. a reference with identical numerics (bf16 matmul path).
    ref_bf16 = projection_mlp_ref_bf16(x, w1_t, gamma, beta, w2_t)
    assert jnp.allclose(out, ref_bf16, atol=2e-3, rtol=2e-3), \
        "mismatch vs bf16-path reference"

    # Loose sanity check vs. the exact f32 module semantics.
    ref_f32 = projection_mlp_ref_f32(x, w1_t, gamma, beta, w2_t)
    assert jnp.allclose(out, ref_f32, atol=1e-1, rtol=1e-1), \
        "mismatch vs f32 reference"

    print("KERNEL_OK")
</pallas_src>

<mosaic_0001>
module attributes {stable_mosaic.version = 11 : i64} {
  func.func @projection_mlp_kernel(%arg0: memref<8x32xf32, #tpu.memory_space<vmem>>, %arg1: memref<32x64xbf16, #tpu.memory_space<vmem>>, %arg2: memref<1x64xf32, #tpu.memory_space<vmem>>, %arg3: memref<1x64xf32, #tpu.memory_space<vmem>>, %arg4: memref<64x64xbf16, #tpu.memory_space<vmem>>, %arg5: memref<8x64xf32, #tpu.memory_space<vmem>>) attributes {dimension_semantics = [], scalar_prefetch = 0 : i64, scratch_operands = 0 : i64, tpu.core_type = #tpu.core_type<tc>} {
    %c0 = arith.constant 0 : index
    %c0_0 = arith.constant 0 : index
    %0 = vector.load %arg0[%c0, %c0_0] : memref<8x32xf32, #tpu.memory_space<vmem>>, vector<8x32xf32>
    %1 = arith.truncf %0 : vector<8x32xf32> to vector<8x32xbf16>
    %c0_1 = arith.constant 0 : index
    %c0_2 = arith.constant 0 : index
    %2 = vector.load %arg1[%c0_1, %c0_2] : memref<32x64xbf16, #tpu.memory_space<vmem>>, vector<32x64xbf16>
    %cst = arith.constant dense<0.000000e+00> : vector<8x64xf32>
    %3 = tpu.matmul %1, %2, %cst {dimension_numbers = #tpu.dot_dimension_numbers<[1], [0], [0], [1], [0, 0, 1, 1], [], []>} : vector<8x32xbf16>, vector<32x64xbf16>, vector<8x64xf32> -> vector<8x64xf32>
    %cst_3 = arith.constant dense<0.000000e+00> : vector<64xf32>
    %4 = vector.multi_reduction <add>, %3, %cst_3 [0] : vector<8x64xf32> to vector<64xf32>
    %5 = vector.shape_cast %4 : vector<64xf32> to vector<1x64xf32>
    %cst_4 = arith.constant 8.000000e+00 : f32
    %6 = vector.broadcast %cst_4 : f32 to vector<1x64xf32>
    %7 = arith.divf %5, %6 : vector<1x64xf32>
    %8 = vector.broadcast %7 : vector<1x64xf32> to vector<8x64xf32>
    %9 = arith.subf %3, %8 : vector<8x64xf32>
    %10 = arith.mulf %9, %9 : vector<8x64xf32>
    %cst_5 = arith.constant dense<0.000000e+00> : vector<64xf32>
    %11 = vector.multi_reduction <add>, %10, %cst_5 [0] : vector<8x64xf32> to vector<64xf32>
    %12 = vector.shape_cast %11 : vector<64xf32> to vector<1x64xf32>
    %cst_6 = arith.constant 8.000000e+00 : f32
    %13 = vector.broadcast %cst_6 : f32 to vector<1x64xf32>
    %14 = arith.divf %12, %13 : vector<1x64xf32>
    %c0_7 = arith.constant 0 : index
    %c0_8 = arith.constant 0 : index
    %15 = vector.load %arg2[%c0_7, %c0_8] : memref<1x64xf32, #tpu.memory_space<vmem>>, vector<1x64xf32>
    %cst_9 = arith.constant 9.99999974E-6 : f32
    %16 = vector.broadcast %cst_9 : f32 to vector<1x64xf32>
    %17 = arith.addf %14, %16 : vector<1x64xf32>
    %18 = math.rsqrt %17 : vector<1x64xf32>
    %19 = arith.mulf %15, %18 : vector<1x64xf32>
    %20 = vector.broadcast %19 : vector<1x64xf32> to vector<8x64xf32>
    %21 = arith.mulf %9, %20 : vector<8x64xf32>
    %c0_10 = arith.constant 0 : index
    %c0_11 = arith.constant 0 : index
    %22 = vector.load %arg3[%c0_10, %c0_11] : memref<1x64xf32, #tpu.memory_space<vmem>>, vector<1x64xf32>
    %23 = vector.broadcast %22 : vector<1x64xf32> to vector<8x64xf32>
    %24 = arith.addf %21, %23 : vector<8x64xf32>
    %cst_12 = arith.constant 0.000000e+00 : f32
    %25 = vector.broadcast %cst_12 : f32 to vector<8x64xf32>
    %26 = arith.maximumf %24, %25 : vector<8x64xf32>
    %27 = arith.truncf %26 : vector<8x64xf32> to vector<8x64xbf16>
    %c0_13 = arith.constant 0 : index
    %c0_14 = arith.constant 0 : index
    %28 = vector.load %arg4[%c0_13, %c0_14] : memref<64x64xbf16, #tpu.memory_space<vmem>>, vector<64x64xbf16>
    %cst_15 = arith.constant dense<0.000000e+00> : vector<8x64xf32>
    %29 = tpu.matmul %27, %28, %cst_15 {dimension_numbers = #tpu.dot_dimension_numbers<[1], [0], [0], [1], [0, 0, 1, 1], [], []>} : vector<8x64xbf16>, vector<64x64xbf16>, vector<8x64xf32> -> vector<8x64xf32>
    %cst_16 = arith.constant dense<0.000000e+00> : vector<64xf32>
    %30 = vector.multi_reduction <add>, %29, %cst_16 [0] : vector<8x64xf32> to vector<64xf32>
    %31 = vector.shape_cast %30 : vector<64xf32> to vector<1x64xf32>
    %cst_17 = arith.constant 8.000000e+00 : f32
    %32 = vector.broadcast %cst_17 : f32 to vector<1x64xf32>
    %33 = arith.divf %31, %32 : vector<1x64xf32>
    %34 = vector.broadcast %33 : vector<1x64xf32> to vector<8x64xf32>
    %35 = arith.subf %29, %34 : vector<8x64xf32>
    %36 = arith.mulf %35, %35 : vector<8x64xf32>
    %cst_18 = arith.constant dense<0.000000e+00> : vector<64xf32>
    %37 = vector.multi_reduction <add>, %36, %cst_18 [0] : vector<8x64xf32> to vector<64xf32>
    %38 = vector.shape_cast %37 : vector<64xf32> to vector<1x64xf32>
    %cst_19 = arith.constant 8.000000e+00 : f32
    %39 = vector.broadcast %cst_19 : f32 to vector<1x64xf32>
    %40 = arith.divf %38, %39 : vector<1x64xf32>
    %cst_20 = arith.constant 9.99999974E-6 : f32
    %41 = vector.broadcast %cst_20 : f32 to vector<1x64xf32>
    %42 = arith.addf %40, %41 : vector<1x64xf32>
    %43 = math.rsqrt %42 : vector<1x64xf32>
    %44 = vector.broadcast %43 : vector<1x64xf32> to vector<8x64xf32>
    %45 = arith.mulf %35, %44 : vector<8x64xf32>
    %c0_21 = arith.constant 0 : index
    %c0_22 = arith.constant 0 : index
    %46 = vector.load %arg5[%c0_21, %c0_22] : memref<8x64xf32, #tpu.memory_space<vmem>>, vector<8x64xf32>
    tpu.vector_store %arg5[%c0_21, %c0_22], %45 {strides = array<i32>} : memref<8x64xf32, #tpu.memory_space<vmem>>, vector<8x64xf32>,
    return
  }
}

</mosaic_0001>

<llo_original>
// kernel: projection_mlp.1
$region0: #{projection_mlp.1}
  #allocation0 [shape = 'u32[]', space=smem, size = 0x4, offset = 0x4, fixed_abs, tag = 'smem constant byte address 0x4 - core index']
  #allocation1 [shape = 'u32[144,128]{1,0:T(1,128)}', space=vmem, size = 0x12000, scoped, tag = 'internal scratch']
  %s0 = inlined_call_operand.hbm [shape: f32[8,32], index: 0, kind: input, shape index: {}]
  %s1 = inlined_call_operand.hbm [shape: bf16[32,64], index: 1, kind: input, shape index: {}]
  %s2 = inlined_call_operand.vmem [shape: f32[1,64], index: 2, kind: input, shape index: {}]
  %s3 = inlined_call_operand.vmem [shape: f32[1,64], index: 3, kind: input, shape index: {}]
  %s4 = inlined_call_operand.hbm [shape: bf16[64,64], index: 4, kind: input, shape index: {}]
  %s5 = inlined_call_operand.hbm [shape: f32[8,64], index: 5, kind: output, shape index: {}]
  %s6 = sld [smem:[#allocation0]]
  $region42: #{projection_mlp.1} parent=0
    _
  %s8 = ssub.s32 1, %s6
  %s9 = scalar_select 0, %s8, %s6
  $region1: #{projection_mlp.1} parent=0
    #allocation2 [shape = 'u8[4096]{0}', space=vmem, size = 0x1000, scoped, tag = 'input window, operand 0, single buffered']
    #allocation3 [shape = 's32[1]{0}', space=sflag, size = 0x4, scoped, tag = 'scoped memory for projection_mlp.1']
    #allocation4 [shape = 's32[1]{0}', space=sflag, size = 0x4, scoped, tag = 'scoped memory for projection_mlp.1']
    #allocation5 [shape = 'u8[8192]{0}', space=vmem, size = 0x2000, scoped, tag = 'input window, operand 1, single buffered']
    #allocation6 [shape = 's32[1]{0}', space=sflag, size = 0x4, scoped, tag = 'scoped memory for projection_mlp.1']
    #allocation7 [shape = 'u8[16384]{0}', space=vmem, size = 0x4000, scoped, tag = 'input window, operand 4, single buffered']
    #allocation8 [shape = 'u8[4096]{0}', space=vmem, size = 0x1000, scoped, tag = 'output window, operand 0, single buffered']
    %10 = vsyncpa [#allocation3], 0
    %11 = vsyncpa [#allocation6], 0
    %12 = vsyncpa [#allocation4], 0
    // Predicated region
    $region2: #{projection_mlp.1} parent=1 // pred_check
      _
    $region3: #{projection_mlp.1} parent=1 // pred_check_branch
      %14 = sbr.rel (0) target = $region5
    $region4: #{projection_mlp.1} parent=1 // pred_region
      %s16 = ssub.s32 128, 128
      %17 = vsyncadd [#allocation3], %s16
      %s19 = sshll.u32 [#allocation2], 4
      %s20 = int_to_ptr.vmem [resolvable:$true] %s19
      %22 = dma.hbm_to_vmem [thread:$0]  %s0, 128, %s20, [#allocation3]
    $region5: #{projection_mlp.1} parent=1 // pred_fallthru
      _
    // Predicated region
    $region6: #{projection_mlp.1} parent=1 // pred_check
      _
    $region7: #{projection_mlp.1} parent=1 // pred_check_branch
      %24 = sbr.rel (0) target = $region9
    $region8: #{projection_mlp.1} parent=1 // pred_region
      %s26 = ssub.s32 256, 256
      %27 = vsyncadd [#allocation6], %s26
      %s28 = sshll.u32 [#allocation5], 4
      %s29 = int_to_ptr.vmem [resolvable:$true] %s28
      %34 = dma.hbm_to_vmem [thread:$0]  %s1, 256, %s29, [#allocation6], 64, 64, 4
    $region9: #{projection_mlp.1} parent=1 // pred_fallthru
      _
    // Predicated region
    $region10: #{projection_mlp.1} parent=1 // pred_check
      _
    $region11: #{projection_mlp.1} parent=1 // pred_check_branch
      %36 = sbr.rel (0) target = $region13
    $region12: #{projection_mlp.1} parent=1 // pred_region
      _
    $region13: #{projection_mlp.1} parent=1 // pred_fallthru
      _
    // Predicated region
    $region14: #{projection_mlp.1} parent=1 // pred_check
      _
    $region15: #{projection_mlp.1} parent=1 // pred_check_branch
      %38 = sbr.rel (0) target = $region17
    $region16: #{projection_mlp.1} parent=1 // pred_region
      _
    $region17: #{projection_mlp.1} parent=1 // pred_fallthru
      _
    // Predicated region
    $region18: #{projection_mlp.1} parent=1 // pred_check
      _
    $region19: #{projection_mlp.1} parent=1 // pred_check_branch
      %40 = sbr.rel (0) target = $region21
    $region20: #{projection_mlp.1} parent=1 // pred_region
      %s42 = ssub.s32 512, 512
      %43 = vsyncadd [#allocation6], %s42
      %s44 = sshll.u32 [#allocation7], 4
      %s45 = int_to_ptr.vmem [resolvable:$true] %s44
      %50 = dma.hbm_to_vmem [thread:$0]  %s4, 512, %s45, [#allocation6], 64, 64, 4
    $region21: #{projection_mlp.1} parent=1 // pred_fallthru
      _
    // Predicated region
    $region22: #{projection_mlp.1} parent=1 // pred_check
      _
    $region23: #{projection_mlp.1} parent=1 // pred_check_branch
      %52 = sbr.rel (0) target = $region25
    $region24: #{projection_mlp.1} parent=1 // pred_region
      %53 = dma.done [#allocation3], 128
    $region25: #{projection_mlp.1} parent=1 // pred_fallthru
      _
    // Predicated region
    $region26: #{projection_mlp.1} parent=1 // pred_check
      _
    $region27: #{projection_mlp.1} parent=1 // pred_check_branch
      %55 = sbr.rel (0) target = $region29
    $region28: #{projection_mlp.1} parent=1 // pred_region
      %56 = dma.done [#allocation6], 256
    $region29: #{projection_mlp.1} parent=1 // pred_fallthru
      _
    // Predicated region
    $region30: #{projection_mlp.1} parent=1 // pred_check
      _
    $region31: #{projection_mlp.1} parent=1 // pred_check_branch
      %58 = sbr.rel (0) target = $region33
    $region32: #{projection_mlp.1} parent=1 // pred_region
      %59 = dma.done [#allocation6], 512
    $region33: #{projection_mlp.1} parent=1 // pred_fallthru
      _
    %v61 = vld [vmem:[#allocation2] sm:$0xff]
    %v62 = vpack.c.bf16 %v61, %v61
    %v63 = vld [vmem:[#allocation5] sm:$0xf]
    %v64 = vld [vmem:[#allocation5 + $0x4] sm:$0xf]
    %v65 = vld [vmem:[#allocation5 + $0x8] sm:$0xf]
    %v66 = vld [vmem:[#allocation5 + $0xc] sm:$0xf]
    %v71 = vunpack.c.l.b16 %v63
    %v72 = vunpack.c.l.b16 %v64
    %v73 = vunpack.c.l.b16 %v65
    %v74 = vunpack.c.l.b16 %v66
    %v75 = vpack.c.b16 %v72, %v71
    %v76 = vpack.c.b16 %v74, %v73
    %vm79 = vcmask 261120
    %v81 = vsel %vm79, %v62, 0
    %83 = vmatprep.subr.bf16.mxu0 0
    %84 = vmatpush1.bf16.msra.mxu0 %v75
    %85 = vmatprep.subr.bf16.mxu0 0
    %86 = vmatpush1.bf16.msra.mxu0 %v76
    %87 = vmatprep.subr.bf16.mxu0 0
    %88 = vmatpush1.bf16.msra.mxu0 0
    %89 = vmatprep.subr.bf16.mxu0 0
    %90 = vmatpush1.bf16.msra.mxu0 0
    %91 = vmatprep.subr.bf16.mxu0 0
    %92 = vmatpush1.bf16.msra.mxu0 0
    %93 = vmatprep.subr.bf16.mxu0 0
    %94 = vmatpush1.bf16.msra.mxu0 0
    %95 = vmatprep.subr.bf16.mxu0 0
    %96 = vmatpush1.bf16.msra.mxu0 0
    %97 = vmatprep.subr.bf16.mxu0 0
    %98 = vmatpush1.bf16.msra.mxu0 0
    %99 = vmatprep.subr.bf16.mxu0 0
    %100 = vmatpush1.bf16.msra.mxu0 0
    %101 = vmatprep.subr.bf16.mxu0 0
    %102 = vmatpush1.bf16.msra.mxu0 0
    %103 = vmatprep.subr.bf16.mxu0 0
    %104 = vmatpush1.bf16.msra.mxu0 0
    %105 = vmatprep.subr.bf16.mxu0 0
    %106 = vmatpush1.bf16.msra.mxu0 0
    %107 = vmatprep.subr.bf16.mxu0 0
    %108 = vmatpush1.bf16.msra.mxu0 0
    %109 = vmatprep.subr.bf16.mxu0 0
    %110 = vmatpush1.bf16.msra.mxu0 0
    %111 = vmatprep.subr.bf16.mxu0 0
    %112 = vmatpush1.bf16.msra.mxu0 0
    %113 = vmatprep.subr.bf16.mxu0 0
    %114 = vmatpush1.bf16.msra.mxu0 0
    %115 = vmatprep.mubr.bf16.mxu0 0
    %116 = vmatmul.mubr.bf16.gmra.mrb[0].mxu0 %v81
    %v117 = vpop.f32.mrb[0].mxu0
    %v118 = vadd.f32 0.0, %v117
    %v119 = vpop.f32.mrb[0].mxu0
    %v120 = vpop.f32.mrb[0].mxu0
    %v121 = vpop.f32.mrb[0].mxu0
    %122 = vdwg.mxu0
    %vm123 = vcmask 523264
    %v124 = vsel %vm123, %v118, 0.0
    %v125 = vrot.slane %v124, 4
    %v126 = vadd.f32 %v124, %v125
    %v127 = vrot.slane %v126, 2
    %v128 = vadd.f32 %v126, %v127
    %v129 = vrot.slane %v128, 1
    %v130 = vadd.f32 %v128, %v129
    %v131 = vrcp.pop 8.0
    %v132 = vmul.f32 %v130, %v131
    %v133 = vsub.f32 %v118, %v132
    %v134 = vmul.f32 %v133, %v133
    %v135 = vsel %vm123, %v134, 0.0
    %v136 = vrot.slane %v135, 4
    %v137 = vadd.f32 %v135, %v136
    %v138 = vrot.slane %v137, 2
    %v139 = vadd.f32 %v137, %v138
    %v140 = vrot.slane %v139, 1
    %v141 = vadd.f32 %v139, %v140
    %v142 = vmul.f32 %v141, %v131
    %v143 = vld [vmem:[%s2] sm:$0x1]
    %v144 = vadd.f32 %v142, 1e-05
    %v145 = vrsqrt.pop %v144
    %v146 = vmul.f32 %v143, %v145
    %v148 = vlaneseq
    %v149 = vshrl.u32 %v148, 7
    %v150 = vsub.s32 0, %v149
    %v151 = vrot.slane %v146, %v150
    %v153 = vmul.f32 %v133, %v151
    %v154 = vld [vmem:[%s3] sm:$0x1]
    %v156 = vlaneseq
    %v157 = vshrl.u32 %v156, 7
    %v158 = vsub.s32 0, %v157
    %v159 = vrot.slane %v154, %v158
    %v161 = vadd.f32 %v153, %v159
    %v162 = vmax.f32 %v161, 0.0
    %v163 = vpack.c.bf16 %v162, %v162
    %v164 = vld [vmem:[#allocation7] sm:$0xf]
    %v165 = vld [vmem:[#allocation7 + $0x4] sm:$0xf]
    %v166 = vld [vmem:[#allocation7 + $0x8] sm:$0xf]
    %v167 = vld [vmem:[#allocation7 + $0xc] sm:$0xf]
    %v168 = vld [vmem:[#allocation7 + $0x10] sm:$0xf]
    %v169 = vld [vmem:[#allocation7 + $0x14] sm:$0xf]
    %v170 = vld [vmem:[#allocation7 + $0x18] sm:$0xf]
    %v171 = vld [vmem:[#allocation7 + $0x1c] sm:$0xf]
    %v180 = vunpack.c.l.b16 %v164
    %v181 = vunpack.c.l.b16 %v165
    %v182 = vunpack.c.l.b16 %v166
    %v183 = vunpack.c.l.b16 %v167
    %v184 = vunpack.c.l.b16 %v168
    %v185 = vunpack.c.l.b16 %v169
    %v186 = vunpack.c.l.b16 %v170
    %v187 = vunpack.c.l.b16 %v171
    %v188 = vpack.c.b16 %v181, %v180
    %v189 = vpack.c.b16 %v183, %v182
    %v190 = vpack.c.b16 %v185, %v184
    %v191 = vpack.c.b16 %v187, %v186
    %v197 = vsel %vm123, %v163, 0
    %199 = vmatprep.subr.bf16.mxu0 0
    %200 = vmatpush1.bf16.msra.mxu0 %v188
    %201 = vmatprep.subr.bf16.mxu0 0
    %202 = vmatpush1.bf16.msra.mxu0 %v189
    %203 = vmatprep.subr.bf16.mxu0 0
    %204 = vmatpush1.bf16.msra.mxu0 %v190
    %205 = vmatprep.subr.bf16.mxu0 0
    %206 = vmatpush1.bf16.msra.mxu0 %v191
    %207 = vmatprep.subr.bf16.mxu0 0
    %208 = vmatpush1.bf16.msra.mxu0 0
    %209 = vmatprep.subr.bf16.mxu0 0
    %210 = vmatpush1.bf16.msra.mxu0 0
    %211 = vmatprep.subr.bf16.mxu0 0
    %212 = vmatpush1.bf16.msra.mxu0 0
    %213 = vmatprep.subr.bf16.mxu0 0
    %214 = vmatpush1.bf16.msra.mxu0 0
    %215 = vmatprep.subr.bf16.mxu0 0
    %216 = vmatpush1.bf16.msra.mxu0 0
    %217 = vmatprep.subr.bf16.mxu0 0
    %218 = vmatpush1.bf16.msra.mxu0 0
    %219 = vmatprep.subr.bf16.mxu0 0
    %220 = vmatpush1.bf16.msra.mxu0 0
    %221 = vmatprep.subr.bf16.mxu0 0
    %222 = vmatpush1.bf16.msra.mxu0 0
    %223 = vmatprep.subr.bf16.mxu0 0
    %224 = vmatpush1.bf16.msra.mxu0 0
    %225 = vmatprep.subr.bf16.mxu0 0
    %226 = vmatpush1.bf16.msra.mxu0 0
    %227 = vmatprep.subr.bf16.mxu0 0
    %228 = vmatpush1.bf16.msra.mxu0 0
    %229 = vmatprep.subr.bf16.mxu0 0
    %230 = vmatpush1.bf16.msra.mxu0 0
    %231 = vmatprep.mubr.bf16.mxu0 0
    %232 = vmatmul.mubr.bf16.gmra.mrb[0].mxu0 %v197
    %v233 = vpop.f32.mrb[0].mxu0
    %v234 = vadd.f32 0.0, %v233
    %v235 = vpop.f32.mrb[0].mxu0
    %v236 = vpop.f32.mrb[0].mxu0
    %v237 = vpop.f32.mrb[0].mxu0
    %238 = vdwg.mxu0
    %v239 = vsel %vm123, %v234, 0.0
    %v240 = vrot.slane %v239, 4
    %v241 = vadd.f32 %v239, %v240
    %v242 = vrot.slane %v241, 2
    %v243 = vadd.f32 %v241, %v242
    %v244 = vrot.slane %v243, 1
    %v245 = vadd.f32 %v243, %v244
    %v246 = vmul.f32 %v245, %v131
    %v247 = vsub.f32 %v234, %v246
    %v248 = vmul.f32 %v247, %v247
    %v249 = vsel %vm123, %v248, 0.0
    %v250 = vrot.slane %v249, 4
    %v251 = vadd.f32 %v249, %v250
    %v252 = vrot.slane %v251, 2
    %v253 = vadd.f32 %v251, %v252
    %v254 = vrot.slane %v253, 1
    %v255 = vadd.f32 %v253, %v254
    %v256 = vmul.f32 %v255, %v131
    %v257 = vadd.f32 %v256, 1e-05
    %v258 = vrsqrt.pop %v257
    %v259 = vmul.f32 %v247, %v258
    %260 = vst.msk [vmem:[#allocation8] sm:$0xff] %vm123, %v259
    // Predicated region
    $region34: #{projection_mlp.1} parent=1 // pred_check
      _
    $region35: #{projection_mlp.1} parent=1 // pred_check_branch
      %262 = sbr.rel (0) target = $region37
    $region36: #{projection_mlp.1} parent=1 // pred_region
      %s264 = ssub.s32 128, 128
      %265 = vsyncadd [#allocation4], %s264
      %s267 = sshll.u32 [#allocation8], 4
      %s268 = int_to_ptr.vmem [resolvable:$true] %s267
      %270 = dma.vmem_to_hbm [thread:$0]  %s268, 128, %s5, [#allocation4]
    $region37: #{projection_mlp.1} parent=1 // pred_fallthru
      _
    // Predicated region
    $region38: #{projection_mlp.1} parent=1 // pred_check
      _
    $region39: #{projection_mlp.1} parent=1 // pred_check_branch
      %272 = sbr.rel (0) target = $region41
    $region40: #{projection_mlp.1} parent=1 // pred_region
      %273 = dma.done [#allocation4], 128
    $region41: #{projection_mlp.1} parent=1 // pred_fallthru
      _
    %274 = vsyncpa [#allocation3], 1
    %275 = vsyncpa [#allocation6], 1
    %276 = vsyncpa [#allocation4], 1

</llo_original>
